<compile_context>
chip_gen: v7x
topology: tpu7x:2x2x1
jax: 0.10.0
libtpu: 0.0.40
codegen_flags: <defaults>
</compile_context>

<pallas_src>
import functools

import numpy as np
import jax
import jax.numpy as jnp
from jax import lax
from jax.experimental import pallas as pl
from jax.experimental.pallas import tpu as pltpu

_MIB = 1 << 20


def _vmem_capacity_bytes() -> int:
    """Physical VMEM per core; conservative (v7x-sized) fallback if query fails."""
    try:
        return int(pltpu.get_tpu_info().vmem_capacity_bytes)
    except Exception:
        return 64 * _MIB


def _largest_divisor_leq(n: int, cap: int) -> int:
    cap = max(1, min(cap, n))
    for d in range(cap, 0, -1):
        if n % d == 0:
            return d
    return 1


# --------------------------------------------------------------------------
# Fused path: whole (nx, nx) system per grid step, batched over block_b.
# --------------------------------------------------------------------------
def _lmi_lyap_fused_kernel(a_ref, p_ref, out_ref, *, matmul_bf16: bool):
    # a_ref, p_ref, out_ref: (block_b, nx, nx) VMEM tiles.
    # In-kernel upcast (inputs are DMA'd at their native dtype).
    a = a_ref[...].astype(jnp.float32)
    p = p_ref[...].astype(jnp.float32)
    # symP_(): symmetrize the Lyapunov certificate (f32 epilogue, v5e-safe).
    psym = 0.5 * (p + jnp.swapaxes(p, -1, -2))
    if matmul_bf16:
        lhs = psym.astype(jnp.bfloat16)
        rhs = a.astype(jnp.bfloat16)
    else:
        lhs, rhs = psym, a
    # Single batched MXU pass: Psym @ A.  Since Psym is symmetric,
    # A^T Psym == (Psym A)^T, so the second matmul of the reference collapses
    # to an XLU transpose (different bundle slot than the MXU -> ~free).
    pa = jnp.einsum('bij,bjk->bik', lhs, rhs, preferred_element_type=jnp.float32)
    out_ref[...] = (-(pa + jnp.swapaxes(pa, -1, -2))).astype(out_ref.dtype)


# --------------------------------------------------------------------------
# Tiled path for large nx (does not fit VMEM as a whole system).
# --------------------------------------------------------------------------
def _symmetrize_kernel(p_ij_ref, p_ji_ref, ps_ref):
    # Psym[b, iblk, jblk] = 0.5 * (P[b, iblk, jblk] + P[b, jblk, iblk]^T)
    p_ij = p_ij_ref[...].astype(jnp.float32)
    p_ji = p_ji_ref[...].astype(jnp.float32)
    ps_ref[...] = (0.5 * (p_ij + jnp.swapaxes(p_ji, -1, -2))).astype(ps_ref.dtype)


def _lmi_lyap_tiled_kernel(a_i_ref, ps_i_ref, a_j_ref, ps_j_ref, out_ref, acc_ref,
                           *, matmul_bf16: bool):
    # Blocks (leading batch dim of size 1 indexed away):
    #   a_i  = A[b,    kblk, iblk]   (tk, tn)
    #   ps_i = Psym[b, kblk, iblk]   (tk, tn)
    #   a_j  = A[b,    kblk, jblk]   (tk, tn)
    #   ps_j = Psym[b, kblk, jblk]   (tk, tn)
    #   out  = M[b,    iblk, jblk]   (1, tn, tn)
    k = pl.program_id(3)

    @pl.when(k == 0)
    def _():
        acc_ref[...] = jnp.zeros_like(acc_ref)

    cd = jnp.bfloat16 if matmul_bf16 else jnp.float32
    a_i = a_i_ref[0].astype(cd)
    ps_i = ps_i_ref[0].astype(cd)
    a_j = a_j_ref[0].astype(cd)
    ps_j = ps_j_ref[0].astype(cd)

    # Contract over the leading (k) axis of both operands; f32 accumulation.
    dn = (((0,), (0,)), ((), ()))
    acc_ref[...] += (
        lax.dot_general(a_i, ps_j, dn, preferred_element_type=jnp.float32)    # (A^T Psym)[i,j]
        + lax.dot_general(ps_i, a_j, dn, preferred_element_type=jnp.float32)  # (Psym A)[i,j]
    )

    @pl.when(k == pl.num_programs(3) - 1)
    def _():
        out_ref[0] = (-acc_ref[...]).astype(out_ref.dtype)


# --------------------------------------------------------------------------
# Wrapper
# --------------------------------------------------------------------------
def lmi_lyap_forward(P, A, *, block_b=None, matmul_bf16=None, mode="auto",
                     tile_n=None, tile_k=None, out_dtype=jnp.float32):
    """Returns M = -(A^T Psym + Psym A) with Psym = 0.5*(P + P^T).

    Accepts a single system (nx, nx) or a batch (B, nx, nx).
    """
    single = (A.ndim == 2)
    if single:
        A, P = A[None], P[None]
    if A.shape != P.shape or A.shape[-1] != A.shape[-2]:
        raise ValueError(f"A/P must be matching square batches, got {A.shape}, {P.shape}")
    B, nx, _ = A.shape

    if matmul_bf16 is None:
        # MXU is bf16-native; at small nx the kernel is DMA/overhead bound and
        # bf16 operands buy nothing, so keep full f32 precision there.
        matmul_bf16 = nx >= 512

    vmem_cap = _vmem_capacity_bytes()
    # ~64 MiB on v5e/v6e (128 MiB physical), ~48 MiB on v7x (64 MiB physical).
    vmem_limit = int(max(32 * _MIB, min((vmem_cap * 3) // 4, 64 * _MIB)))
    # Budget for a single set of blocks; leaves room for double-buffering (x2)
    # and f32 in-kernel intermediates.
    block_budget = vmem_limit // 4

    per_system_bytes = 3 * nx * nx * 4  # A, P, out blocks (f32) per system
    if mode == "auto":
        # TODO(synk): nx not a multiple of 128 and too big for VMEM would need
        # padding for the tiled path; stay fused in that (unlikely) corner.
        mode = "tiled" if (per_system_bytes > block_budget and nx % 128 == 0) else "fused"

    if mode == "fused":
        if block_b is None:
            cap = max(1, block_budget // per_system_bytes)
            if B >= 2:
                cap = min(cap, B // 2)   # keep >= 2 blocks: shards across the 2 v7x TCs
            block_b = _largest_divisor_leq(B, cap)
        if B % block_b != 0:
            raise ValueError(f"block_b={block_b} must divide batch={B}")

        bytes_in = B * nx * nx * (A.dtype.itemsize + P.dtype.itemsize)
        cost = pl.CostEstimate(flops=2 * B * nx ** 3, transcendentals=0,
                               bytes_accessed=int(bytes_in + B * nx * nx * 4))

        out = pl.pallas_call(
            functools.partial(_lmi_lyap_fused_kernel, matmul_bf16=matmul_bf16),
            out_shape=jax.ShapeDtypeStruct((B, nx, nx), out_dtype),
            grid=(B // block_b,),
            in_specs=[
                pl.BlockSpec((block_b, nx, nx), lambda i: (i, 0, 0)),   # A block
                pl.BlockSpec((block_b, nx, nx), lambda i: (i, 0, 0)),   # P block
            ],
            out_specs=pl.BlockSpec((block_b, nx, nx), lambda i: (i, 0, 0)),
            compiler_params=pltpu.CompilerParams(
                dimension_semantics=("parallel",),
                vmem_limit_bytes=vmem_limit),
            cost_estimate=cost,
        )(A, P)
        return out[0] if single else out

    # ---------------- tiled path (large nx) ----------------
    def _pick_tile(n, candidates):
        for t in candidates:
            if n % t == 0:
                return t
        return None

    # 256-wide tiles feed the v6e/v7x 256x256 MXU; 128 also matches v5e's 4x128^2.
    tn = tile_n or _pick_tile(nx, (256, 128))
    tk = tile_k or _pick_tile(nx, (512, 256, 128))
    if tn is None or tk is None:
        raise ValueError(f"tiled path requires nx divisible by 128, got nx={nx}")

    psym_dtype = jnp.bfloat16 if matmul_bf16 else jnp.float32
    # Pre-pass: Psym = 0.5*(P + P^T), tiled (reads two transposed-position blocks of P).
    psym = pl.pallas_call(
        _symmetrize_kernel,
        out_shape=jax.ShapeDtypeStruct((B, nx, nx), psym_dtype),
        grid=(B, nx // tn, nx // tn),
        in_specs=[
            pl.BlockSpec((1, tn, tn), lambda b, i, j: (b, i, j)),
            pl.BlockSpec((1, tn, tn), lambda b, i, j: (b, j, i)),
        ],
        out_specs=pl.BlockSpec((1, tn, tn), lambda b, i, j: (b, i, j)),
        compiler_params=pltpu.CompilerParams(
            dimension_semantics=("parallel", "parallel", "parallel"),
            vmem_limit_bytes=vmem_limit),
    )(P, P)

    ni, nj, nk = nx // tn, nx // tn, nx // tk
    a_bytes = A.dtype.itemsize
    p_bytes = jnp.dtype(psym_dtype).itemsize
    cost = pl.CostEstimate(
        flops=4 * B * nx ** 3, transcendentals=0,
        bytes_accessed=int(2 * B * nx * nx * (a_bytes + p_bytes) * nj + B * nx * nx * 4))

    out = pl.pallas_call(
        functools.partial(_lmi_lyap_tiled_kernel, matmul_bf16=matmul_bf16),
        out_shape=jax.ShapeDtypeStruct((B, nx, nx), out_dtype),
        grid=(B, ni, nj, nk),
        in_specs=[
            pl.BlockSpec((1, tk, tn), lambda b, i, j, k: (b, k, i)),   # A[:, kblk, iblk]
            pl.BlockSpec((1, tk, tn), lambda b, i, j, k: (b, k, i)),   # Psym[:, kblk, iblk]
            pl.BlockSpec((1, tk, tn), lambda b, i, j, k: (b, k, j)),   # A[:, kblk, jblk]
            pl.BlockSpec((1, tk, tn), lambda b, i, j, k: (b, k, j)),   # Psym[:, kblk, jblk]
        ],
        out_specs=pl.BlockSpec((1, tn, tn), lambda b, i, j, k: (b, i, j)),
        scratch_shapes=[pltpu.VMEM((tn, tn), jnp.float32)],
        compiler_params=pltpu.CompilerParams(
            dimension_semantics=("parallel", "parallel", "parallel", "arbitrary"),
            vmem_limit_bytes=vmem_limit),
        cost_estimate=cost,
    )(A, psym, A, psym)
    return out[0] if single else out


# --------------------------------------------------------------------------
# Self-test
# --------------------------------------------------------------------------
if __name__ == "__main__":
    key = jax.random.PRNGKey(0)
    k_a, k_p, k_a2, k_p2 = jax.random.split(key, 4)

    def make_inputs(ka, kp, batch, nx):
        eye = jnp.eye(nx, dtype=jnp.float32)
        # Stable (Hurwitz-ish) A and symmetric positive-definite P per system.
        A = -1.5 * eye[None] + 0.05 * jax.random.normal(ka, (batch, nx, nx), jnp.float32)
        R = 0.1 * jax.random.normal(kp, (batch, nx, nx), jnp.float32)
        P = eye[None] + 0.1 * jnp.einsum('bij,bkj->bik', R, R)   # I + 0.1 * R R^T
        return A, P

    def reference(A, P):
        An = np.asarray(A, dtype=np.float64)
        Pn = np.asarray(P, dtype=np.float64)
        Ps = 0.5 * (Pn + np.swapaxes(Pn, -1, -2))
        return -(np.swapaxes(An, -1, -2) @ Ps + Ps @ An)

    # Tolerance covers either MXU lowering of f32 matmuls (native f32 passes or
    # bf16 passes); real bugs (sign/transpose/formula) produce O(0.1+) errors.
    RTOL = ATOL = 2e-2

    # ---- small shipped size: fused path (block_b sized to VMEM, capped at B//2) ----
    nx, batch = 32, 8
    A, P = make_inputs(k_a, k_p, batch, nx)

    # TODO(synk): eigendecomposition has no Pallas equivalent; the "P is SDP"
    # assertion of forward() is checked host-side with numpy eigvalsh.
    Psym_h = 0.5 * (np.asarray(P) + np.swapaxes(np.asarray(P), -1, -2))
    for b in range(batch):
        if not np.all(np.linalg.eigvalsh(Psym_h[b]) > 0):
            raise AssertionError("P is not SDP")

    M = jax.block_until_ready(lmi_lyap_forward(P, A))
    np.testing.assert_allclose(np.asarray(M), reference(A, P), rtol=RTOL, atol=ATOL)

    # ---- exercise the large-nx tiled fallback at a small-but-tileable size ----
    nx2, batch2 = 256, 2
    A2, P2 = make_inputs(k_a2, k_p2, batch2, nx2)
    M2 = jax.block_until_ready(
        lmi_lyap_forward(P2, A2, mode="tiled", tile_n=128, tile_k=128))
    np.testing.assert_allclose(np.asarray(M2), reference(A2, P2), rtol=RTOL, atol=ATOL)

    print("KERNEL_OK")
</pallas_src>

<mosaic_0001>
module attributes {stable_mosaic.version = 11 : i64} {
  func.func @_lmi_lyap_fused_kernel(%arg0: i32, %arg1: memref<4x32x32xf32, #tpu.memory_space<vmem>>, %arg2: memref<4x32x32xf32, #tpu.memory_space<vmem>>, %arg3: memref<4x32x32xf32, #tpu.memory_space<vmem>>) attributes {dimension_semantics = [#tpu.dimension_semantics<parallel>], iteration_bounds = array<i64: 2>, scalar_prefetch = 0 : i64, scratch_operands = 0 : i64, tpu.core_type = #tpu.core_type<tc>, window_params = [{transform_indices = @transform_0, window_bounds = array<i64: 4, 32, 32>}, {transform_indices = @transform_1, window_bounds = array<i64: 4, 32, 32>}, {transform_indices = @transform_2, window_bounds = array<i64: 4, 32, 32>}]} {
    %c0 = arith.constant 0 : index
    %c0_0 = arith.constant 0 : index
    %c0_1 = arith.constant 0 : index
    %0 = vector.load %arg1[%c0, %c0_0, %c0_1] : memref<4x32x32xf32, #tpu.memory_space<vmem>>, vector<4x32x32xf32>
    %c0_2 = arith.constant 0 : index
    %c0_3 = arith.constant 0 : index
    %c0_4 = arith.constant 0 : index
    %1 = vector.load %arg2[%c0_2, %c0_3, %c0_4] : memref<4x32x32xf32, #tpu.memory_space<vmem>>, vector<4x32x32xf32>
    %2 = tpu.transpose %1, [0, 2, 1] : vector<4x32x32xf32> -> vector<4x32x32xf32>
    %3 = arith.addf %1, %2 : vector<4x32x32xf32>
    %cst = arith.constant 5.000000e-01 : f32
    %4 = vector.broadcast %cst : f32 to vector<4x32x32xf32>
    %5 = arith.mulf %4, %3 : vector<4x32x32xf32>
    "tpu.trace_start"() <{level = 10 : i32, message = "bij,bjk->bik"}> : () -> ()
    %cst_5 = arith.constant dense<0.000000e+00> : vector<4x32x32xf32>
    %6 = tpu.matmul %5, %0, %cst_5 {dimension_numbers = #tpu.dot_dimension_numbers<[2], [1], [1], [2], [0, 0, 0, 1, 1, 2], [0], [0]>} : vector<4x32x32xf32>, vector<4x32x32xf32>, vector<4x32x32xf32> -> vector<4x32x32xf32>
    "tpu.trace_stop"() : () -> ()
    %7 = tpu.transpose %6, [0, 2, 1] : vector<4x32x32xf32> -> vector<4x32x32xf32>
    %8 = arith.addf %6, %7 : vector<4x32x32xf32>
    %cst_6 = arith.constant 0.000000e+00 : f32
    %9 = vector.broadcast %cst_6 : f32 to vector<4x32x32xf32>
    %10 = arith.subf %9, %8 : vector<4x32x32xf32>
    %c0_7 = arith.constant 0 : index
    %c0_8 = arith.constant 0 : index
    %c0_9 = arith.constant 0 : index
    %11 = vector.load %arg3[%c0_7, %c0_8, %c0_9] : memref<4x32x32xf32, #tpu.memory_space<vmem>>, vector<4x32x32xf32>
    tpu.vector_store %arg3[%c0_7, %c0_8, %c0_9], %10 {strides = array<i32>} : memref<4x32x32xf32, #tpu.memory_space<vmem>>, vector<4x32x32xf32>,
    return
  }
  func.func @transform_0(%arg0: i32) -> (i32, i32, i32) {
    %c0_i32 = arith.constant 0 : i32
    %c0_i32_0 = arith.constant 0 : i32
    %c0_i32_1 = arith.constant 0 : i32
    return %arg0, %c0_i32, %c0_i32_0 : i32, i32, i32
  }
  func.func @transform_1(%arg0: i32) -> (i32, i32, i32) {
    %c0_i32 = arith.constant 0 : i32
    %c0_i32_0 = arith.constant 0 : i32
    %c0_i32_1 = arith.constant 0 : i32
    return %arg0, %c0_i32, %c0_i32_0 : i32, i32, i32
  }
  func.func @transform_2(%arg0: i32) -> (i32, i32, i32) {
    %c0_i32 = arith.constant 0 : i32
    %c0_i32_0 = arith.constant 0 : i32
    %c0_i32_1 = arith.constant 0 : i32
    return %arg0, %c0_i32, %c0_i32_0 : i32, i32, i32
  }
}

</mosaic_0001>

<llo_original>
// kernel: tpu_custom_call.1
$region0: #{tpu_custom_call.1}
  #allocation0 [shape = 'u32[]', space=smem, size = 0x4, offset = 0x4, fixed_abs, tag = 'smem constant byte address 0x4 - core index']
  #allocation1 [shape = 'u32[144,128]{1,0:T(1,128)}', space=vmem, size = 0x12000, scoped, tag = 'internal scratch']
  %s0 = inlined_call_operand.hbm [shape: f32[8,32,32], index: 0, kind: input, shape index: {}]
  %s1 = inlined_call_operand.hbm [shape: f32[8,32,32], index: 1, kind: input, shape index: {}]
  %s2 = inlined_call_operand.hbm [shape: f32[8,32,32], index: 2, kind: output, shape index: {}]
  %s3 = sld [smem:[#allocation0]]
  $region49: #{tpu_custom_call.1} parent=0
    _
  %s5 = ssub.s32 1, %s3
  %s6 = scalar_select 0, %s5, %s3
  $region1: #{tpu_custom_call.1} parent=0
    #allocation2 [shape = 'u8[131072]{0}', space=vmem, size = 0x20000, scoped, tag = 'input window, operand 0']
    #allocation3 [shape = 's32[2]{0}', space=sflag, size = 0x8, scoped, tag = 'scoped memory for tpu_custom_call.1']
    #allocation4 [shape = 's32[2]{0}', space=sflag, size = 0x8, scoped, tag = 'scoped memory for tpu_custom_call.1']
    #allocation5 [shape = 'u8[131072]{0}', space=vmem, size = 0x20000, scoped, tag = 'input window, operand 1']
    #allocation6 [shape = 's32[2]{0}', space=sflag, size = 0x8, scoped, tag = 'scoped memory for tpu_custom_call.1']
    #allocation7 [shape = 'u8[131072]{0}', space=vmem, size = 0x20000, scoped, tag = 'output window, operand 0']
    %7 = vsyncpa [#allocation3], 0
    %s8 = scalar_lea.sflag [#allocation3], 1
    %9 = vsyncpa %s8, 0
    %10 = vsyncpa [#allocation6], 0
    %s11 = scalar_lea.sflag [#allocation6], 1
    %12 = vsyncpa %s11, 0
    %13 = vsyncpa [#allocation4], 0
    %s14 = scalar_lea.sflag [#allocation4], 1
    %15 = vsyncpa %s14, 0
    loop: start=0, step=1, limit=4
    $region2: #{tpu_custom_call.1} parent=1 // loop_pre_header
      _
    $region3: #{tpu_custom_call.1} parent=1 // loop_header
      %s17 = sphi 0, %s21
      %p18 = scmp.ge.s32.totalorder %s17, 4
      %s27 = sphi 0, %s29
      %s30 = sphi 0, %s27
      %s31 = sphi 0, %s30
      %s47 = sphi 0, %s31
      %s53 = sphi 0, %s55
      %s56 = sphi 0, %s53
      %s57 = sphi 0, %s56
      %s73 = sphi 0, %s57
      %s79 = sphi 0, %s81
      %s82 = sphi 0, %s79
      %s83 = sphi 0, %s82
      %s99 = sphi 0, %s83
    $region4: #{tpu_custom_call.1} parent=1 // loop_header_branch
      %20 = sbr.rel (%p18) target = $region8
    $region5: #{tpu_custom_call.1} parent=1 // loop_body
      %s22 = ssub.s32 %s17, 1
      %s23 = ssub.s32 %s17, 2
      %s24 = sadd.s32 %s17, 1
      %s25 = ssub.s32 %s17, %s24
      %p26 = scmp.eq.s32.totalorder %s25, 0
      %s28 = sadd.s32 %s27, 1
      %s29 = scalar_select %p26, %s27, %s28
      %p32 = pneg %p26
      %p33 = scmp.eq.s32.totalorder %s17, 1
      %p34 = por %p32, %p33
      %p35 = scmp.ne.s32.totalorder %s27, %s30
      %p36 = scmp.eq.s32.totalorder %s17, 0
      %p37 = por %p35, %p36
      %p38 = scmp.ne.s32.totalorder %s27, %s30
      %p39 = scmp.eq.s32.totalorder %s22, 1
      %p40 = por %p38, %p39
      %p41 = scmp.ne.s32.totalorder %s30, %s31
      %p42 = scmp.eq.s32.totalorder %s22, 0
      %p43 = por %p41, %p42
      %p44 = scmp.ne.s32.totalorder %s30, %s31
      %p45 = scmp.eq.s32.totalorder %s23, 1
      %p46 = por %p44, %p45
      %p48 = scmp.ne.s32.totalorder %s31, %s47
      %p49 = scmp.eq.s32.totalorder %s23, 0
      %p50 = por %p48, %p49
      %s51 = ssub.s32 %s17, %s24
      %p52 = scmp.eq.s32.totalorder %s51, 0
      %s54 = sadd.s32 %s53, 1
      %s55 = scalar_select %p52, %s53, %s54
      %p58 = pneg %p52
      %p59 = scmp.eq.s32.totalorder %s17, 1
      %p60 = por %p58, %p59
      %p61 = scmp.ne.s32.totalorder %s53, %s56
      %p62 = scmp.eq.s32.totalorder %s17, 0
      %p63 = por %p61, %p62
      %p64 = scmp.ne.s32.totalorder %s53, %s56
      %p65 = scmp.eq.s32.totalorder %s22, 1
      %p66 = por %p64, %p65
      %p67 = scmp.ne.s32.totalorder %s56, %s57
      %p68 = scmp.eq.s32.totalorder %s22, 0
      %p69 = por %p67, %p68
      %p70 = scmp.ne.s32.totalorder %s56, %s57
      %p71 = scmp.eq.s32.totalorder %s23, 1
      %p72 = por %p70, %p71
      %p74 = scmp.ne.s32.totalorder %s57, %s73
      %p75 = scmp.eq.s32.totalorder %s23, 0
      %p76 = por %p74, %p75
      %s77 = ssub.s32 %s17, %s24
      %p78 = scmp.eq.s32.totalorder %s77, 0
      %s80 = sadd.s32 %s79, 1
      %s81 = scalar_select %p78, %s79, %s80
      %p84 = pneg %p78
      %p85 = scmp.eq.s32.totalorder %s17, 1
      %p86 = por %p84, %p85
      %p87 = scmp.ne.s32.totalorder %s79, %s82
      %p88 = scmp.eq.s32.totalorder %s17, 0
      %p89 = por %p87, %p88
      %p90 = scmp.ne.s32.totalorder %s79, %s82
      %p91 = scmp.eq.s32.totalorder %s22, 1
      %p92 = por %p90, %p91
      %p93 = scmp.ne.s32.totalorder %s82, %s83
      %p94 = scmp.eq.s32.totalorder %s22, 0
      %p95 = por %p93, %p94
      %p96 = scmp.ne.s32.totalorder %s82, %s83
      %p97 = scmp.eq.s32.totalorder %s23, 1
      %p98 = por %p96, %p97
      %p100 = scmp.ne.s32.totalorder %s83, %s99
      %p101 = scmp.eq.s32.totalorder %s23, 0
      %p102 = por %p100, %p101
      %p103 = scmp.le.s32.totalorder 1, %s17
      %p104 = scmp.lt.s32.totalorder %s17, 3
      %p105 = pnand %p103, %p104
      %p106 = pneg %p105
      // Predicated region
      $region9: #{tpu_custom_call.1} parent=5 // pred_check
        _
      $region10: #{tpu_custom_call.1} parent=5 // pred_check_branch
        %108 = sbr.rel (%p105) target = $region12
      $region11: #{tpu_custom_call.1} parent=5 // pred_region
        %s109 = ssub.s32 %s17, 1
      $region12: #{tpu_custom_call.1} parent=5 // pred_fallthru
        _
      %p110 = scmp.lt.s32.totalorder %s17, 2
      // Predicated region
      $region13: #{tpu_custom_call.1} parent=5 // pred_check
        %p111 = pneg %p110
      $region14: #{tpu_custom_call.1} parent=5 // pred_check_branch
        %113 = sbr.rel (%p111) target = $region16
      $region15: #{tpu_custom_call.1} parent=5 // pred_region
        // Predicated region
        $region17: #{tpu_custom_call.1} parent=15 // pred_check
          %p114 = pneg %p37
        $region18: #{tpu_custom_call.1} parent=15 // pred_check_branch
          %116 = sbr.rel (%p114) target = $region20
        $region19: #{tpu_custom_call.1} parent=15 // pred_region
          %s117 = sand.u32 %s27, 1
          %s118 = scalar_lea.sflag [#allocation3], %s117
          %s119 = sand.u32 %s27, 1
          %s120 = smul.addr %s119, 128
          %s121 = scalar_lea.vmem [#allocation2], %s120
          %s122 = smul.u32 4, %s17
          %s124 = ssub.s32 2048, 2048
          %125 = vsyncadd %s118, %s124
          %s126 = smul.addr %s122, 4
          %s127 = smul.addr %s126, 128
          %s128 = scalar_lea.hbm %s0, %s127
          %s129 = sshll.u32 %s121, 4
          %s130 = int_to_ptr.vmem [resolvable:$true] %s129
          %135 = dma.hbm_to_vmem [thread:$0]  %s128, 2048, %s130, %s118, 128, 128, 8
        $region20: #{tpu_custom_call.1} parent=15 // pred_fallthru
          _
        // Predicated region
        $region21: #{tpu_custom_call.1} parent=15 // pred_check
          %p136 = pneg %p63
        $region22: #{tpu_custom_call.1} parent=15 // pred_check_branch
          %138 = sbr.rel (%p136) target = $region24
        $region23: #{tpu_custom_call.1} parent=15 // pred_region
          %s139 = sand.u32 %s53, 1
          %s140 = scalar_lea.sflag [#allocation6], %s139
          %s141 = sand.u32 %s53, 1
          %s142 = smul.addr %s141, 128
          %s143 = scalar_lea.vmem [#allocation5], %s142
          %s144 = smul.u32 4, %s17
          %s146 = ssub.s32 2048, 2048
          %147 = vsyncadd %s140, %s146
          %s148 = smul.addr %s144, 4
          %s149 = smul.addr %s148, 128
          %s150 = scalar_lea.hbm %s1, %s149
          %s151 = sshll.u32 %s143, 4
          %s152 = int_to_ptr.vmem [resolvable:$true] %s151
          %157 = dma.hbm_to_vmem [thread:$0]  %s150, 2048, %s152, %s140, 128, 128, 8
        $region24: #{tpu_custom_call.1} parent=15 // pred_fallthru
          _
      $region16: #{tpu_custom_call.1} parent=5 // pred_fallthru
        _
      %p158 = scmp.le.s32.totalorder 1, %s17
      %p159 = scmp.lt.s32.totalorder %s17, 3
      %p160 = pnand %p158, %p159
      %p161 = pneg %p160
      // Predicated region
      $region25: #{tpu_custom_call.1} parent=5 // pred_check
        _
      $region26: #{tpu_custom_call.1} parent=5 // pred_check_branch
        %163 = sbr.rel (%p160) target = $region28
      $region27: #{tpu_custom_call.1} parent=5 // pred_region
        %s164 = ssub.s32 %s17, 1
        %s165 = sand.u32 %s30, 1
        %s166 = scalar_lea.sflag [#allocation3], %s165
        %s167 = sand.u32 %s30, 1
        %s168 = smul.addr %s167, 128
        %s169 = scalar_lea.vmem [#allocation2], %s168
        // Predicated region
        $region29: #{tpu_custom_call.1} parent=27 // pred_check
          %p170 = pneg %p43
        $region30: #{tpu_custom_call.1} parent=27 // pred_check_branch
          %172 = sbr.rel (%p170) target = $region32
        $region31: #{tpu_custom_call.1} parent=27 // pred_region
          %173 = dma.done %s166, 2048
        $region32: #{tpu_custom_call.1} parent=27 // pred_fallthru
          _
        %s174 = sand.u32 %s56, 1
        %s175 = scalar_lea.sflag [#allocation6], %s174
        %s176 = sand.u32 %s56, 1
        %s177 = smul.addr %s176, 128
        %s178 = scalar_lea.vmem [#allocation5], %s177
        // Predicated region
        $region33: #{tpu_custom_call.1} parent=27 // pred_check
          %p179 = pneg %p69
        $region34: #{tpu_custom_call.1} parent=27 // pred_check_branch
          %181 = sbr.rel (%p179) target = $region36
        $region35: #{tpu_custom_call.1} parent=27 // pred_region
          %182 = dma.done %s175, 2048
        $region36: #{tpu_custom_call.1} parent=27 // pred_fallthru
          _
        %s183 = sand.u32 %s30, 1
        %s184 = scalar_lea.sflag [#allocation3], %s183
        %s185 = sand.u32 %s30, 1
        %s186 = smul.addr %s185, 128
        %s187 = scalar_lea.vmem [#allocation2], %s186
        %p188 = pneg %p43
        %p189 = pneg %p40
        %s190 = sand.u32 %s56, 1
        %s191 = scalar_lea.sflag [#allocation6], %s190
        %s192 = sand.u32 %s56, 1
        %s193 = smul.addr %s192, 128
        %s194 = scalar_lea.vmem [#allocation5], %s193
        %p195 = pneg %p69
        %p196 = pneg %p66
        %p197 = pneg %p95
        %p198 = pneg %p92
        %s199 = sand.u32 %s82, 1
        %s200 = scalar_lea.sflag [#allocation4], %s199
        %s201 = sand.u32 %s82, 1
        %s202 = smul.addr %s201, 128
        %s203 = scalar_lea.vmem [#allocation7], %s202
        %s204 = smul.u32 4, %s22
        %s205 = smul.u32 4, %s22
        %s206 = smul.u32 4, %s22
        %v207 = vld [vmem:[%s169] sm:$0xff]
        %v208 = vld [vmem:[%s169 + $0x8] sm:$0xff]
        %v209 = vld [vmem:[%s169 + $0x10] sm:$0xff]
        %v210 = vld [vmem:[%s169 + $0x18] sm:$0xff]
        %v211 = vld [vmem:[%s169 + $0x20] sm:$0xff]
        %v212 = vld [vmem:[%s169 + $0x28] sm:$0xff]
        %v213 = vld [vmem:[%s169 + $0x30] sm:$0xff]
        %v214 = vld [vmem:[%s169 + $0x38] sm:$0xff]
        %v215 = vld [vmem:[%s169 + $0x40] sm:$0xff]
        %v216 = vld [vmem:[%s169 + $0x48] sm:$0xff]
        %v217 = vld [vmem:[%s169 + $0x50] sm:$0xff]
        %v218 = vld [vmem:[%s169 + $0x58] sm:$0xff]
        %v219 = vld [vmem:[%s169 + $0x60] sm:$0xff]
        %v220 = vld [vmem:[%s169 + $0x68] sm:$0xff]
        %v221 = vld [vmem:[%s169 + $0x70] sm:$0xff]
        %v222 = vld [vmem:[%s169 + $0x78] sm:$0xff]
        %v223 = vld [vmem:[%s178] sm:$0xff]
        %v224 = vld [vmem:[%s178 + $0x8] sm:$0xff]
        %v225 = vld [vmem:[%s178 + $0x10] sm:$0xff]
        %v226 = vld [vmem:[%s178 + $0x18] sm:$0xff]
        %v227 = vld [vmem:[%s178 + $0x20] sm:$0xff]
        %v228 = vld [vmem:[%s178 + $0x28] sm:$0xff]
        %v229 = vld [vmem:[%s178 + $0x30] sm:$0xff]
        %v230 = vld [vmem:[%s178 + $0x38] sm:$0xff]
        %v231 = vld [vmem:[%s178 + $0x40] sm:$0xff]
        %v232 = vld [vmem:[%s178 + $0x48] sm:$0xff]
        %v233 = vld [vmem:[%s178 + $0x50] sm:$0xff]
        %v234 = vld [vmem:[%s178 + $0x58] sm:$0xff]
        %v235 = vld [vmem:[%s178 + $0x60] sm:$0xff]
        %v236 = vld [vmem:[%s178 + $0x68] sm:$0xff]
        %v237 = vld [vmem:[%s178 + $0x70] sm:$0xff]
        %v238 = vld [vmem:[%s178 + $0x78] sm:$0xff]
        %239 = vxpose.xlu0.b32.start [1/16] %v223, 128
        %240 = vxpose.xlu0.b32.cont [2/16] %v224, 128
        %241 = vxpose.xlu0.b32.cont [3/16] %v225, 128
        %242 = vxpose.xlu0.b32.cont [4/16] %v226, 128
        %243 = vxpose.xlu0.b32.cont [5/16] 0.0, 128
        %244 = vxpose.xlu0.b32.cont [6/16] 0.0, 128
        %245 = vxpose.xlu0.b32.cont [7/16] 0.0, 128
        %246 = vxpose.xlu0.b32.cont [8/16] 0.0, 128
        %247 = vxpose.xlu0.b32.cont [9/16] 0.0, 128
        %248 = vxpose.xlu0.b32.cont [10/16] 0.0, 128
        %249 = vxpose.xlu0.b32.cont [11/16] 0.0, 128
        %250 = vxpose.xlu0.b32.cont [12/16] 0.0, 128
        %251 = vxpose.xlu0.b32.cont [13/16] 0.0, 128
        %252 = vxpose.xlu0.b32.cont [14/16] 0.0, 128
        %253 = vxpose.xlu0.b32.cont [15/16] 0.0, 128
        %254 = vxpose.xlu0.b32.end [16/16] 0.0, 128
        %v255 = vpop.trf.xlu0
        %v256 = vpop.trf.xlu0
        %v257 = vpop.trf.xlu0
        %v258 = vpop.trf.xlu0
        %v259 = vpop.trf.xlu0
        %v260 = vpop.trf.xlu0
        %v261 = vpop.trf.xlu0
        %v262 = vpop.trf.xlu0
        %v263 = vpop.trf.xlu0
        %v264 = vpop.trf.xlu0
        %v265 = vpop.trf.xlu0
        %v266 = vpop.trf.xlu0
        %v267 = vpop.trf.xlu0
        %v268 = vpop.trf.xlu0
        %v269 = vpop.trf.xlu0
        %v270 = vpop.trf.xlu0
        %271 = vxpose.xlu0.b32.start [1/16] %v227, 128
        %272 = vxpose.xlu0.b32.cont [2/16] %v228, 128
        %273 = vxpose.xlu0.b32.cont [3/16] %v229, 128
        %274 = vxpose.xlu0.b32.cont [4/16] %v230, 128
        %275 = vxpose.xlu0.b32.cont [5/16] 0.0, 128
        %276 = vxpose.xlu0.b32.cont [6/16] 0.0, 128
        %277 = vxpose.xlu0.b32.cont [7/16] 0.0, 128
        %278 = vxpose.xlu0.b32.cont [8/16] 0.0, 128
        %279 = vxpose.xlu0.b32.cont [9/16] 0.0, 128
        %280 = vxpose.xlu0.b32.cont [10/16] 0.0, 128
        %281 = vxpose.xlu0.b32.cont [11/16] 0.0, 128
        %282 = vxpose.xlu0.b32.cont [12/16] 0.0, 128
        %283 = vxpose.xlu0.b32.cont [13/16] 0.0, 128
        %284 = vxpose.xlu0.b32.cont [14/16] 0.0, 128
        %285 = vxpose.xlu0.b32.cont [15/16] 0.0, 128
        %286 = vxpose.xlu0.b32.end [16/16] 0.0, 128
        %v287 = vpop.trf.xlu0
        %v288 = vpop.trf.xlu0
        %v289 = vpop.trf.xlu0
        %v290 = vpop.trf.xlu0
        %v291 = vpop.trf.xlu0
        %v292 = vpop.trf.xlu0
        %v293 = vpop.trf.xlu0
        %v294 = vpop.trf.xlu0
        %v295 = vpop.trf.xlu0
        %v296 = vpop.trf.xlu0
        %v297 = vpop.trf.xlu0
        %v298 = vpop.trf.xlu0
        %v299 = vpop.trf.xlu0
        %v300 = vpop.trf.xlu0
        %v301 = vpop.trf.xlu0
        %v302 = vpop.trf.xlu0
        %303 = vxpose.xlu0.b32.start [1/16] %v231, 128
        %304 = vxpose.xlu0.b32.cont [2/16] %v232, 128
        %305 = vxpose.xlu0.b32.cont [3/16] %v233, 128
        %306 = vxpose.xlu0.b32.cont [4/16] %v234, 128
        %307 = vxpose.xlu0.b32.cont [5/16] 0.0, 128
        %308 = vxpose.xlu0.b32.cont [6/16] 0.0, 128
        %309 = vxpose.xlu0.b32.cont [7/16] 0.0, 128
        %310 = vxpose.xlu0.b32.cont [8/16] 0.0, 128
        %311 = vxpose.xlu0.b32.cont [9/16] 0.0, 128
        %312 = vxpose.xlu0.b32.cont [10/16] 0.0, 128
        %313 = vxpose.xlu0.b32.cont [11/16] 0.0, 128
        %314 = vxpose.xlu0.b32.cont [12/16] 0.0, 128
        %315 = vxpose.xlu0.b32.cont [13/16] 0.0, 128
        %316 = vxpose.xlu0.b32.cont [14/16] 0.0, 128
        %317 = vxpose.xlu0.b32.cont [15/16] 0.0, 128
        %318 = vxpose.xlu0.b32.end [16/16] 0.0, 128
        %v319 = vpop.trf.xlu0
        %v320 = vpop.trf.xlu0
        %v321 = vpop.trf.xlu0
        %v322 = vpop.trf.xlu0
        %v323 = vpop.trf.xlu0
        %v324 = vpop.trf.xlu0
        %v325 = vpop.trf.xlu0
        %v326 = vpop.trf.xlu0
        %v327 = vpop.trf.xlu0
        %v328 = vpop.trf.xlu0
        %v329 = vpop.trf.xlu0
        %v330 = vpop.trf.xlu0
        %v331 = vpop.trf.xlu0
        %v332 = vpop.trf.xlu0
        %v333 = vpop.trf.xlu0
        %v334 = vpop.trf.xlu0
        %335 = vxpose.xlu0.b32.start [1/16] %v235, 128
        %336 = vxpose.xlu0.b32.cont [2/16] %v236, 128
        %337 = vxpose.xlu0.b32.cont [3/16] %v237, 128
        %338 = vxpose.xlu0.b32.cont [4/16] %v238, 128
        %339 = vxpose.xlu0.b32.cont [5/16] 0.0, 128
        %340 = vxpose.xlu0.b32.cont [6/16] 0.0, 128
        %341 = vxpose.xlu0.b32.cont [7/16] 0.0, 128
        %342 = vxpose.xlu0.b32.cont [8/16] 0.0, 128
        %343 = vxpose.xlu0.b32.cont [9/16] 0.0, 128
        %344 = vxpose.xlu0.b32.cont [10/16] 0.0, 128
        %345 = vxpose.xlu0.b32.cont [11/16] 0.0, 128
        %346 = vxpose.xlu0.b32.cont [12/16] 0.0, 128
        %347 = vxpose.xlu0.b32.cont [13/16] 0.0, 128
        %348 = vxpose.xlu0.b32.cont [14/16] 0.0, 128
        %349 = vxpose.xlu0.b32.cont [15/16] 0.0, 128
        %350 = vxpose.xlu0.b32.end [16/16] 0.0, 128
        %v351 = vpop.trf.xlu0
        %v352 = vpop.trf.xlu0
        %v353 = vpop.trf.xlu0
        %v354 = vpop.trf.xlu0
        %v355 = vpop.trf.xlu0
        %v356 = vpop.trf.xlu0
        %v357 = vpop.trf.xlu0
        %v358 = vpop.trf.xlu0
        %v359 = vpop.trf.xlu0
        %v360 = vpop.trf.xlu0
        %v361 = vpop.trf.xlu0
        %v362 = vpop.trf.xlu0
        %v363 = vpop.trf.xlu0
        %v364 = vpop.trf.xlu0
        %v365 = vpop.trf.xlu0
        %v366 = vpop.trf.xlu0
        %v367 = vadd.f32 %v223, %v255
        %v368 = vadd.f32 %v224, %v256
        %v369 = vadd.f32 %v225, %v257
        %v370 = vadd.f32 %v226, %v258
        %v371 = vadd.f32 %v227, %v287
        %v372 = vadd.f32 %v228, %v288
        %v373 = vadd.f32 %v229, %v289
        %v374 = vadd.f32 %v230, %v290
        %v375 = vadd.f32 %v231, %v319
        %v376 = vadd.f32 %v232, %v320
        %v377 = vadd.f32 %v233, %v321
        %v378 = vadd.f32 %v234, %v322
        %v379 = vadd.f32 %v235, %v351
        %v380 = vadd.f32 %v236, %v352
        %v381 = vadd.f32 %v237, %v353
        %v382 = vadd.f32 %v238, %v354
        %v383 = vmul.f32 %v367, 0.5
        %v384 = vmul.f32 %v368, 0.5
        %v385 = vmul.f32 %v369, 0.5
        %v386 = vmul.f32 %v370, 0.5
        %v387 = vmul.f32 %v371, 0.5
        %v388 = vmul.f32 %v372, 0.5
        %v389 = vmul.f32 %v373, 0.5
        %v390 = vmul.f32 %v374, 0.5
        %v391 = vmul.f32 %v375, 0.5
        %v392 = vmul.f32 %v376, 0.5
        %v393 = vmul.f32 %v377, 0.5
        %v394 = vmul.f32 %v378, 0.5
        %v395 = vmul.f32 %v379, 0.5
        %v396 = vmul.f32 %v380, 0.5
        %v397 = vmul.f32 %v381, 0.5
        %v398 = vmul.f32 %v382, 0.5
        %vm399 = vcmask 261120
        %v401 = vsel %vm399, %v383, 0
        %v404 = vsel %vm399, %v384, 0
        %v407 = vsel %vm399, %v385, 0
        %v410 = vsel %vm399, %v386, 0
        %412 = vmatprep.subr.mxu0 0.0
        %413 = vmatpush1.msra.mxu0 %v207
        %414 = vmatprep.subr.mxu0 0.0
        %415 = vmatpush1.msra.mxu0 %v208
        %416 = vmatprep.subr.mxu0 0.0
        %417 = vmatpush1.msra.mxu0 %v209
        %418 = vmatprep.subr.mxu0 0.0
        %419 = vmatpush1.msra.mxu0 %v210
        %420 = vmatprep.subr.mxu0 0.0
        %421 = vmatpush1.msra.mxu0 0.0
        %422 = vmatprep.subr.mxu0 0.0
        %423 = vmatpush1.msra.mxu0 0.0
        %424 = vmatprep.subr.mxu0 0.0
        %425 = vmatpush1.msra.mxu0 0.0
        %426 = vmatprep.subr.mxu0 0.0
        %427 = vmatpush1.msra.mxu0 0.0
        %428 = vmatprep.subr.mxu0 0.0
        %429 = vmatpush1.msra.mxu0 0.0
        %430 = vmatprep.subr.mxu0 0.0
        %431 = vmatpush1.msra.mxu0 0.0
        %432 = vmatprep.subr.mxu0 0.0
        %433 = vmatpush1.msra.mxu0 0.0
        %434 = vmatprep.subr.mxu0 0.0
        %435 = vmatpush1.msra.mxu0 0.0
        %436 = vmatprep.subr.mxu0 0.0
        %437 = vmatpush1.msra.mxu0 0.0
        %438 = vmatprep.subr.mxu0 0.0
        %439 = vmatpush1.msra.mxu0 0.0
        %440 = vmatprep.subr.mxu0 0.0
        %441 = vmatpush1.msra.mxu0 0.0
        %442 = vmatprep.subr.mxu0 0.0
        %443 = vmatpush1.msra.mxu0 0.0
        %444 = vmatprep.subr.mxu0 0.0
        %445 = vmatpush1.msra.mxu0 0.0
        %446 = vmatprep.subr.mxu0 0.0
        %447 = vmatpush1.msra.mxu0 0.0
        %448 = vmatprep.subr.mxu0 0.0
        %449 = vmatpush1.msra.mxu0 0.0
        %450 = vmatprep.subr.mxu0 0.0
        %451 = vmatpush1.msra.mxu0 0.0
        %452 = vmatprep.subr.mxu0 0.0
        %453 = vmatpush1.msra.mxu0 0.0
        %454 = vmatprep.subr.mxu0 0.0
        %455 = vmatpush1.msra.mxu0 0.0
        %456 = vmatprep.subr.mxu0 0.0
        %457 = vmatpush1.msra.mxu0 0.0
        %458 = vmatprep.subr.mxu0 0.0
        %459 = vmatpush1.msra.mxu0 0.0
        %460 = vmatprep.subr.mxu0 0.0
        %461 = vmatpush1.msra.mxu0 0.0
        %462 = vmatprep.subr.mxu0 0.0
        %463 = vmatpush1.msra.mxu0 0.0
        %464 = vmatprep.subr.mxu0 0.0
        %465 = vmatpush1.msra.mxu0 0.0
        %466 = vmatprep.subr.mxu0 0.0
        %467 = vmatpush1.msra.mxu0 0.0
        %468 = vmatprep.subr.mxu0 0.0
        %469 = vmatpush1.msra.mxu0 0.0
        %470 = vmatprep.subr.mxu0 0.0
        %471 = vmatpush1.msra.mxu0 0.0
        %472 = vmatprep.subr.mxu0 0.0
        %473 = vmatpush1.msra.mxu0 0.0
        %474 = vmatprep.subr.mxu0 0.0
        %475 = vmatpush1.msra.mxu0 0.0
        %476 = vmatprep.mubr.f32.mxu0 0.0
        %477 = vmatmul.mubr.f32.gmra.mrb[0].mxu0 %v401
        %v478 = vpop.f32.mrb[0].mxu0
        %v479 = vadd.f32 0.0, %v478
        %v480 = vpop.f32.mrb[0].mxu0
        %481 = vmatprep.mubr.f32.mxu0 0.0
        %482 = vmatmul.mubr.f32.gmra.mrb[0].mxu0 %v404
        %v483 = vpop.f32.mrb[0].mxu0
        %v484 = vadd.f32 0.0, %v483
        %v485 = vpop.f32.mrb[0].mxu0
        %486 = vmatprep.mubr.f32.mxu0 0.0
        %487 = vmatmul.mubr.f32.gmra.mrb[0].mxu0 %v407
        %v488 = vpop.f32.mrb[0].mxu0
        %v489 = vadd.f32 0.0, %v488
        %v490 = vpop.f32.mrb[0].mxu0
        %491 = vmatprep.mubr.f32.mxu0 0.0
        %492 = vmatmul.mubr.f32.gmra.mrb[0].mxu0 %v410
        %v493 = vpop.f32.mrb[0].mxu0
        %v494 = vadd.f32 0.0, %v493
        %v495 = vpop.f32.mrb[0].mxu0
        %496 = vdwg.mxu0
        %v498 = vsel %vm399, %v387, 0
        %v501 = vsel %vm399, %v388, 0
        %v504 = vsel %vm399, %v389, 0
        %v507 = vsel %vm399, %v390, 0
        %509 = vmatprep.subr.mxu0 0.0
        %510 = vmatpush1.msra.mxu0 %v211
        %511 = vmatprep.subr.mxu0 0.0
        %512 = vmatpush1.msra.mxu0 %v212
        %513 = vmatprep.subr.mxu0 0.0
        %514 = vmatpush1.msra.mxu0 %v213
        %515 = vmatprep.subr.mxu0 0.0
        %516 = vmatpush1.msra.mxu0 %v214
        %517 = vmatprep.subr.mxu0 0.0
        %518 = vmatpush1.msra.mxu0 0.0
        %519 = vmatprep.subr.mxu0 0.0
        %520 = vmatpush1.msra.mxu0 0.0
        %521 = vmatprep.subr.mxu0 0.0
        %522 = vmatpush1.msra.mxu0 0.0
        %523 = vmatprep.subr.mxu0 0.0
        %524 = vmatpush1.msra.mxu0 0.0
        %525 = vmatprep.subr.mxu0 0.0
        %526 = vmatpush1.msra.mxu0 0.0
        %527 = vmatprep.subr.mxu0 0.0
        %528 = vmatpush1.msra.mxu0 0.0
        %529 = vmatprep.subr.mxu0 0.0
        %530 = vmatpush1.msra.mxu0 0.0
        %531 = vmatprep.subr.mxu0 0.0
        %532 = vmatpush1.msra.mxu0 0.0
        %533 = vmatprep.subr.mxu0 0.0
        %534 = vmatpush1.msra.mxu0 0.0
        %535 = vmatprep.subr.mxu0 0.0
        %536 = vmatpush1.msra.mxu0 0.0
        %537 = vmatprep.subr.mxu0 0.0
        %538 = vmatpush1.msra.mxu0 0.0
        %539 = vmatprep.subr.mxu0 0.0
        %540 = vmatpush1.msra.mxu0 0.0
        %541 = vmatprep.subr.mxu0 0.0
        %542 = vmatpush1.msra.mxu0 0.0
        %543 = vmatprep.subr.mxu0 0.0
        %544 = vmatpush1.msra.mxu0 0.0
        %545 = vmatprep.subr.mxu0 0.0
        %546 = vmatpush1.msra.mxu0 0.0
        %547 = vmatprep.subr.mxu0 0.0
        %548 = vmatpush1.msra.mxu0 0.0
        %549 = vmatprep.subr.mxu0 0.0
        %550 = vmatpush1.msra.mxu0 0.0
        %551 = vmatprep.subr.mxu0 0.0
        %552 = vmatpush1.msra.mxu0 0.0
        %553 = vmatprep.subr.mxu0 0.0
        %554 = vmatpush1.msra.mxu0 0.0
        %555 = vmatprep.subr.mxu0 0.0
        %556 = vmatpush1.msra.mxu0 0.0
        %557 = vmatprep.subr.mxu0 0.0
        %558 = vmatpush1.msra.mxu0 0.0
        %559 = vmatprep.subr.mxu0 0.0
        %560 = vmatpush1.msra.mxu0 0.0
        %561 = vmatprep.subr.mxu0 0.0
        %562 = vmatpush1.msra.mxu0 0.0
        %563 = vmatprep.subr.mxu0 0.0
        %564 = vmatpush1.msra.mxu0 0.0
        %565 = vmatprep.subr.mxu0 0.0
        %566 = vmatpush1.msra.mxu0 0.0
        %567 = vmatprep.subr.mxu0 0.0
        %568 = vmatpush1.msra.mxu0 0.0
        %569 = vmatprep.subr.mxu0 0.0
        %570 = vmatpush1.msra.mxu0 0.0
        %571 = vmatprep.subr.mxu0 0.0
        %572 = vmatpush1.msra.mxu0 0.0
        %573 = vmatprep.mubr.f32.mxu0 0.0
        %574 = vmatmul.mubr.f32.gmra.mrb[0].mxu0 %v498
        %v575 = vpop.f32.mrb[0].mxu0
        %v576 = vadd.f32 0.0, %v575
        %v577 = vpop.f32.mrb[0].mxu0
        %578 = vmatprep.mubr.f32.mxu0 0.0
        %579 = vmatmul.mubr.f32.gmra.mrb[0].mxu0 %v501
        %v580 = vpop.f32.mrb[0].mxu0
        %v581 = vadd.f32 0.0, %v580
        %v582 = vpop.f32.mrb[0].mxu0
        %583 = vmatprep.mubr.f32.mxu0 0.0
        %584 = vmatmul.mubr.f32.gmra.mrb[0].mxu0 %v504
        %v585 = vpop.f32.mrb[0].mxu0
        %v586 = vadd.f32 0.0, %v585
        %v587 = vpop.f32.mrb[0].mxu0
        %588 = vmatprep.mubr.f32.mxu0 0.0
        %589 = vmatmul.mubr.f32.gmra.mrb[0].mxu0 %v507
        %v590 = vpop.f32.mrb[0].mxu0
        %v591 = vadd.f32 0.0, %v590
        %v592 = vpop.f32.mrb[0].mxu0
        %593 = vdwg.mxu0
        %v595 = vsel %vm399, %v391, 0
        %v598 = vsel %vm399, %v392, 0
        %v601 = vsel %vm399, %v393, 0
        %v604 = vsel %vm399, %v394, 0
        %606 = vmatprep.subr.mxu0 0.0
        %607 = vmatpush1.msra.mxu0 %v215
        %608 = vmatprep.subr.mxu0 0.0
        %609 = vmatpush1.msra.mxu0 %v216
        %610 = vmatprep.subr.mxu0 0.0
        %611 = vmatpush1.msra.mxu0 %v217
        %612 = vmatprep.subr.mxu0 0.0
        %613 = vmatpush1.msra.mxu0 %v218
        %614 = vmatprep.subr.mxu0 0.0
        %615 = vmatpush1.msra.mxu0 0.0
        %616 = vmatprep.subr.mxu0 0.0
        %617 = vmatpush1.msra.mxu0 0.0
        %618 = vmatprep.subr.mxu0 0.0
        %619 = vmatpush1.msra.mxu0 0.0
        %620 = vmatprep.subr.mxu0 0.0
        %621 = vmatpush1.msra.mxu0 0.0
        %622 = vmatprep.subr.mxu0 0.0
        %623 = vmatpush1.msra.mxu0 0.0
        %624 = vmatprep.subr.mxu0 0.0
        %625 = vmatpush1.msra.mxu0 0.0
        %626 = vmatprep.subr.mxu0 0.0
        %627 = vmatpush1.msra.mxu0 0.0
        %628 = vmatprep.subr.mxu0 0.0
        %629 = vmatpush1.msra.mxu0 0.0
        %630 = vmatprep.subr.mxu0 0.0
        %631 = vmatpush1.msra.mxu0 0.0
        %632 = vmatprep.subr.mxu0 0.0
        %633 = vmatpush1.msra.mxu0 0.0
        %634 = vmatprep.subr.mxu0 0.0
        %635 = vmatpush1.msra.mxu0 0.0
        %636 = vmatprep.subr.mxu0 0.0
        %637 = vmatpush1.msra.mxu0 0.0
        %638 = vmatprep.subr.mxu0 0.0
        %639 = vmatpush1.msra.mxu0 0.0
        %640 = vmatprep.subr.mxu0 0.0
        %641 = vmatpush1.msra.mxu0 0.0
        %642 = vmatprep.subr.mxu0 0.0
        %643 = vmatpush1.msra.mxu0 0.0
        %644 = vmatprep.subr.mxu0 0.0
        %645 = vmatpush1.msra.mxu0 0.0
        %646 = vmatprep.subr.mxu0 0.0
        %647 = vmatpush1.msra.mxu0 0.0
        %648 = vmatprep.subr.mxu0 0.0
        %649 = vmatpush1.msra.mxu0 0.0
        %650 = vmatprep.subr.mxu0 0.0
        %651 = vmatpush1.msra.mxu0 0.0
        %652 = vmatprep.subr.mxu0 0.0
        %653 = vmatpush1.msra.mxu0 0.0
        %654 = vmatprep.subr.mxu0 0.0
        %655 = vmatpush1.msra.mxu0 0.0
        %656 = vmatprep.subr.mxu0 0.0
        %657 = vmatpush1.msra.mxu0 0.0
        %658 = vmatprep.subr.mxu0 0.0
        %659 = vmatpush1.msra.mxu0 0.0
        %660 = vmatprep.subr.mxu0 0.0
        %661 = vmatpush1.msra.mxu0 0.0
        %662 = vmatprep.subr.mxu0 0.0
        %663 = vmatpush1.msra.mxu0 0.0
        %664 = vmatprep.subr.mxu0 0.0
        %665 = vmatpush1.msra.mxu0 0.0
        %666 = vmatprep.subr.mxu0 0.0
        %667 = vmatpush1.msra.mxu0 0.0
        %668 = vmatprep.subr.mxu0 0.0
        %669 = vmatpush1.msra.mxu0 0.0
        %670 = vmatprep.mubr.f32.mxu0 0.0
        %671 = vmatmul.mubr.f32.gmra.mrb[0].mxu0 %v595
        %v672 = vpop.f32.mrb[0].mxu0
        %v673 = vadd.f32 0.0, %v672
        %v674 = vpop.f32.mrb[0].mxu0
        %675 = vmatprep.mubr.f32.mxu0 0.0
        %676 = vmatmul.mubr.f32.gmra.mrb[0].mxu0 %v598
        %v677 = vpop.f32.mrb[0].mxu0
        %v678 = vadd.f32 0.0, %v677
        %v679 = vpop.f32.mrb[0].mxu0
        %680 = vmatprep.mubr.f32.mxu0 0.0
        %681 = vmatmul.mubr.f32.gmra.mrb[0].mxu0 %v601
        %v682 = vpop.f32.mrb[0].mxu0
        %v683 = vadd.f32 0.0, %v682
        %v684 = vpop.f32.mrb[0].mxu0
        %685 = vmatprep.mubr.f32.mxu0 0.0
        %686 = vmatmul.mubr.f32.gmra.mrb[0].mxu0 %v604
        %v687 = vpop.f32.mrb[0].mxu0
        %v688 = vadd.f32 0.0, %v687
        %v689 = vpop.f32.mrb[0].mxu0
        %690 = vdwg.mxu0
        %v692 = vsel %vm399, %v395, 0
        %v695 = vsel %vm399, %v396, 0
        %v698 = vsel %vm399, %v397, 0
        %v701 = vsel %vm399, %v398, 0
        %703 = vmatprep.subr.mxu0 0.0
        %704 = vmatpush1.msra.mxu0 %v219
        %705 = vmatprep.subr.mxu0 0.0
        %706 = vmatpush1.msra.mxu0 %v220
        %707 = vmatprep.subr.mxu0 0.0
        %708 = vmatpush1.msra.mxu0 %v221
        %709 = vmatprep.subr.mxu0 0.0
        %710 = vmatpush1.msra.mxu0 %v222
        %711 = vmatprep.subr.mxu0 0.0
        %712 = vmatpush1.msra.mxu0 0.0
        %713 = vmatprep.subr.mxu0 0.0
        %714 = vmatpush1.msra.mxu0 0.0
        %715 = vmatprep.subr.mxu0 0.0
        %716 = vmatpush1.msra.mxu0 0.0
        %717 = vmatprep.subr.mxu0 0.0
        %718 = vmatpush1.msra.mxu0 0.0
        %719 = vmatprep.subr.mxu0 0.0
        %720 = vmatpush1.msra.mxu0 0.0
        %721 = vmatprep.subr.mxu0 0.0
        %722 = vmatpush1.msra.mxu0 0.0
        %723 = vmatprep.subr.mxu0 0.0
        %724 = vmatpush1.msra.mxu0 0.0
        %725 = vmatprep.subr.mxu0 0.0
        %726 = vmatpush1.msra.mxu0 0.0
        %727 = vmatprep.subr.mxu0 0.0
        %728 = vmatpush1.msra.mxu0 0.0
        %729 = vmatprep.subr.mxu0 0.0
        %730 = vmatpush1.msra.mxu0 0.0
        %731 = vmatprep.subr.mxu0 0.0
        %732 = vmatpush1.msra.mxu0 0.0
        %733 = vmatprep.subr.mxu0 0.0
        %734 = vmatpush1.msra.mxu0 0.0
        %735 = vmatprep.subr.mxu0 0.0
        %736 = vmatpush1.msra.mxu0 0.0
        %737 = vmatprep.subr.mxu0 0.0
        %738 = vmatpush1.msra.mxu0 0.0
        %739 = vmatprep.subr.mxu0 0.0
        %740 = vmatpush1.msra.mxu0 0.0
        %741 = vmatprep.subr.mxu0 0.0
        %742 = vmatpush1.msra.mxu0 0.0
        %743 = vmatprep.subr.mxu0 0.0
        %744 = vmatpush1.msra.mxu0 0.0
        %745 = vmatprep.subr.mxu0 0.0
        %746 = vmatpush1.msra.mxu0 0.0
        %747 = vmatprep.subr.mxu0 0.0
        %748 = vmatpush1.msra.mxu0 0.0
        %749 = vmatprep.subr.mxu0 0.0
        %750 = vmatpush1.msra.mxu0 0.0
        %751 = vmatprep.subr.mxu0 0.0
        %752 = vmatpush1.msra.mxu0 0.0
        %753 = vmatprep.subr.mxu0 0.0
        %754 = vmatpush1.msra.mxu0 0.0
        %755 = vmatprep.subr.mxu0 0.0
        %756 = vmatpush1.msra.mxu0 0.0
        %757 = vmatprep.subr.mxu0 0.0
        %758 = vmatpush1.msra.mxu0 0.0
        %759 = vmatprep.subr.mxu0 0.0
        %760 = vmatpush1.msra.mxu0 0.0
        %761 = vmatprep.subr.mxu0 0.0
        %762 = vmatpush1.msra.mxu0 0.0
        %763 = vmatprep.subr.mxu0 0.0
        %764 = vmatpush1.msra.mxu0 0.0
        %765 = vmatprep.subr.mxu0 0.0
        %766 = vmatpush1.msra.mxu0 0.0
        %767 = vmatprep.mubr.f32.mxu0 0.0
        %768 = vmatmul.mubr.f32.gmra.mrb[0].mxu0 %v692
        %v769 = vpop.f32.mrb[0].mxu0
        %v770 = vadd.f32 0.0, %v769
        %v771 = vpop.f32.mrb[0].mxu0
        %772 = vmatprep.mubr.f32.mxu0 0.0
        %773 = vmatmul.mubr.f32.gmra.mrb[0].mxu0 %v695
        %v774 = vpop.f32.mrb[0].mxu0
        %v775 = vadd.f32 0.0, %v774
        %v776 = vpop.f32.mrb[0].mxu0
        %777 = vmatprep.mubr.f32.mxu0 0.0
        %778 = vmatmul.mubr.f32.gmra.mrb[0].mxu0 %v698
        %v779 = vpop.f32.mrb[0].mxu0
        %v780 = vadd.f32 0.0, %v779
        %v781 = vpop.f32.mrb[0].mxu0
        %782 = vmatprep.mubr.f32.mxu0 0.0
        %783 = vmatmul.mubr.f32.gmra.mrb[0].mxu0 %v701
        %v784 = vpop.f32.mrb[0].mxu0
        %v785 = vadd.f32 0.0, %v784
        %v786 = vpop.f32.mrb[0].mxu0
        %787 = vdwg.mxu0
        %788 = vxpose.xlu0.b32.start [1/16] %v479, 128
        %789 = vxpose.xlu0.b32.cont [2/16] %v484, 128
        %790 = vxpose.xlu0.b32.cont [3/16] %v489, 128
        %791 = vxpose.xlu0.b32.cont [4/16] %v494, 128
        %792 = vxpose.xlu0.b32.cont [5/16] 0.0, 128
        %793 = vxpose.xlu0.b32.cont [6/16] 0.0, 128
        %794 = vxpose.xlu0.b32.cont [7/16] 0.0, 128
        %795 = vxpose.xlu0.b32.cont [8/16] 0.0, 128
        %796 = vxpose.xlu0.b32.cont [9/16] 0.0, 128
        %797 = vxpose.xlu0.b32.cont [10/16] 0.0, 128
        %798 = vxpose.xlu0.b32.cont [11/16] 0.0, 128
        %799 = vxpose.xlu0.b32.cont [12/16] 0.0, 128
        %800 = vxpose.xlu0.b32.cont [13/16] 0.0, 128
        %801 = vxpose.xlu0.b32.cont [14/16] 0.0, 128
        %802 = vxpose.xlu0.b32.cont [15/16] 0.0, 128
        %803 = vxpose.xlu0.b32.end [16/16] 0.0, 128
        %v804 = vpop.trf.xlu0
        %v805 = vpop.trf.xlu0
        %v806 = vpop.trf.xlu0
        %v807 = vpop.trf.xlu0
        %v808 = vpop.trf.xlu0
        %v809 = vpop.trf.xlu0
        %v810 = vpop.trf.xlu0
        %v811 = vpop.trf.xlu0
        %v812 = vpop.trf.xlu0
        %v813 = vpop.trf.xlu0
        %v814 = vpop.trf.xlu0
        %v815 = vpop.trf.xlu0
        %v816 = vpop.trf.xlu0
        %v817 = vpop.trf.xlu0
        %v818 = vpop.trf.xlu0
        %v819 = vpop.trf.xlu0
        %820 = vxpose.xlu0.b32.start [1/16] %v576, 128
        %821 = vxpose.xlu0.b32.cont [2/16] %v581, 128
        %822 = vxpose.xlu0.b32.cont [3/16] %v586, 128
        %823 = vxpose.xlu0.b32.cont [4/16] %v591, 128
        %824 = vxpose.xlu0.b32.cont [5/16] 0.0, 128
        %825 = vxpose.xlu0.b32.cont [6/16] 0.0, 128
        %826 = vxpose.xlu0.b32.cont [7/16] 0.0, 128
        %827 = vxpose.xlu0.b32.cont [8/16] 0.0, 128
        %828 = vxpose.xlu0.b32.cont [9/16] 0.0, 128
        %829 = vxpose.xlu0.b32.cont [10/16] 0.0, 128
        %830 = vxpose.xlu0.b32.cont [11/16] 0.0, 128
        %831 = vxpose.xlu0.b32.cont [12/16] 0.0, 128
        %832 = vxpose.xlu0.b32.cont [13/16] 0.0, 128
        %833 = vxpose.xlu0.b32.cont [14/16] 0.0, 128
        %834 = vxpose.xlu0.b32.cont [15/16] 0.0, 128
        %835 = vxpose.xlu0.b32.end [16/16] 0.0, 128
        %v836 = vpop.trf.xlu0
        %v837 = vpop.trf.xlu0
        %v838 = vpop.trf.xlu0
        %v839 = vpop.trf.xlu0
        %v840 = vpop.trf.xlu0
        %v841 = vpop.trf.xlu0
        %v842 = vpop.trf.xlu0
        %v843 = vpop.trf.xlu0
        %v844 = vpop.trf.xlu0
        %v845 = vpop.trf.xlu0
        %v846 = vpop.trf.xlu0
        %v847 = vpop.trf.xlu0
        %v848 = vpop.trf.xlu0
        %v849 = vpop.trf.xlu0
        %v850 = vpop.trf.xlu0
        %v851 = vpop.trf.xlu0
        %852 = vxpose.xlu0.b32.start [1/16] %v673, 128
        %853 = vxpose.xlu0.b32.cont [2/16] %v678, 128
        %854 = vxpose.xlu0.b32.cont [3/16] %v683, 128
        %855 = vxpose.xlu0.b32.cont [4/16] %v688, 128
        %856 = vxpose.xlu0.b32.cont [5/16] 0.0, 128
        %857 = vxpose.xlu0.b32.cont [6/16] 0.0, 128
        %858 = vxpose.xlu0.b32.cont [7/16] 0.0, 128
        %859 = vxpose.xlu0.b32.cont [8/16] 0.0, 128
        %860 = vxpose.xlu0.b32.cont [9/16] 0.0, 128
        %861 = vxpose.xlu0.b32.cont [10/16] 0.0, 128
        %862 = vxpose.xlu0.b32.cont [11/16] 0.0, 128
        %863 = vxpose.xlu0.b32.cont [12/16] 0.0, 128
        %864 = vxpose.xlu0.b32.cont [13/16] 0.0, 128
        %865 = vxpose.xlu0.b32.cont [14/16] 0.0, 128
        %866 = vxpose.xlu0.b32.cont [15/16] 0.0, 128
        %867 = vxpose.xlu0.b32.end [16/16] 0.0, 128
        %v868 = vpop.trf.xlu0
        %v869 = vpop.trf.xlu0
        %v870 = vpop.trf.xlu0
        %v871 = vpop.trf.xlu0
        %v872 = vpop.trf.xlu0
        %v873 = vpop.trf.xlu0
        %v874 = vpop.trf.xlu0
        %v875 = vpop.trf.xlu0
        %v876 = vpop.trf.xlu0
        %v877 = vpop.trf.xlu0
        %v878 = vpop.trf.xlu0
        %v879 = vpop.trf.xlu0
        %v880 = vpop.trf.xlu0
        %v881 = vpop.trf.xlu0
        %v882 = vpop.trf.xlu0
        %v883 = vpop.trf.xlu0
        %884 = vxpose.xlu0.b32.start [1/16] %v770, 128
        %885 = vxpose.xlu0.b32.cont [2/16] %v775, 128
        %886 = vxpose.xlu0.b32.cont [3/16] %v780, 128
        %887 = vxpose.xlu0.b32.cont [4/16] %v785, 128
        %888 = vxpose.xlu0.b32.cont [5/16] 0.0, 128
        %889 = vxpose.xlu0.b32.cont [6/16] 0.0, 128
        %890 = vxpose.xlu0.b32.cont [7/16] 0.0, 128
        %891 = vxpose.xlu0.b32.cont [8/16] 0.0, 128
        %892 = vxpose.xlu0.b32.cont [9/16] 0.0, 128
        %893 = vxpose.xlu0.b32.cont [10/16] 0.0, 128
        %894 = vxpose.xlu0.b32.cont [11/16] 0.0, 128
        %895 = vxpose.xlu0.b32.cont [12/16] 0.0, 128
        %896 = vxpose.xlu0.b32.cont [13/16] 0.0, 128
        %897 = vxpose.xlu0.b32.cont [14/16] 0.0, 128
        %898 = vxpose.xlu0.b32.cont [15/16] 0.0, 128
        %899 = vxpose.xlu0.b32.end [16/16] 0.0, 128
        %v900 = vpop.trf.xlu0
        %v901 = vpop.trf.xlu0
        %v902 = vpop.trf.xlu0
        %v903 = vpop.trf.xlu0
        %v904 = vpop.trf.xlu0
        %v905 = vpop.trf.xlu0
        %v906 = vpop.trf.xlu0
        %v907 = vpop.trf.xlu0
        %v908 = vpop.trf.xlu0
        %v909 = vpop.trf.xlu0
        %v910 = vpop.trf.xlu0
        %v911 = vpop.trf.xlu0
        %v912 = vpop.trf.xlu0
        %v913 = vpop.trf.xlu0
        %v914 = vpop.trf.xlu0
        %v915 = vpop.trf.xlu0
        %v916 = vadd.f32 %v479, %v804
        %v917 = vadd.f32 %v484, %v805
        %v918 = vadd.f32 %v489, %v806
        %v919 = vadd.f32 %v494, %v807
        %v920 = vadd.f32 %v576, %v836
        %v921 = vadd.f32 %v581, %v837
        %v922 = vadd.f32 %v586, %v838
        %v923 = vadd.f32 %v591, %v839
        %v924 = vadd.f32 %v673, %v868
        %v925 = vadd.f32 %v678, %v869
        %v926 = vadd.f32 %v683, %v870
        %v927 = vadd.f32 %v688, %v871
        %v928 = vadd.f32 %v770, %v900
        %v929 = vadd.f32 %v775, %v901
        %v930 = vadd.f32 %v780, %v902
        %v931 = vadd.f32 %v785, %v903
        %v932 = vsub.f32 0.0, %v916
        %v933 = vsub.f32 0.0, %v917
        %v934 = vsub.f32 0.0, %v918
        %v935 = vsub.f32 0.0, %v919
        %v936 = vsub.f32 0.0, %v920
        %v937 = vsub.f32 0.0, %v921
        %v938 = vsub.f32 0.0, %v922
        %v939 = vsub.f32 0.0, %v923
        %v940 = vsub.f32 0.0, %v924
        %v941 = vsub.f32 0.0, %v925
        %v942 = vsub.f32 0.0, %v926
        %v943 = vsub.f32 0.0, %v927
        %v944 = vsub.f32 0.0, %v928
        %v945 = vsub.f32 0.0, %v929
        %v946 = vsub.f32 0.0, %v930
        %v947 = vsub.f32 0.0, %v931
        %948 = vst.msk [vmem:[%s203] sm:$0xff] %vm399, %v932
        %949 = vst.msk [vmem:[%s203 + $0x8] sm:$0xff] %vm399, %v933
        %950 = vst.msk [vmem:[%s203 + $0x10] sm:$0xff] %vm399, %v934
        %951 = vst.msk [vmem:[%s203 + $0x18] sm:$0xff] %vm399, %v935
        %952 = vst.msk [vmem:[%s203 + $0x20] sm:$0xff] %vm399, %v936
        %953 = vst.msk [vmem:[%s203 + $0x28] sm:$0xff] %vm399, %v937
        %954 = vst.msk [vmem:[%s203 + $0x30] sm:$0xff] %vm399, %v938
        %955 = vst.msk [vmem:[%s203 + $0x38] sm:$0xff] %vm399, %v939
        %956 = vst.msk [vmem:[%s203 + $0x40] sm:$0xff] %vm399, %v940
        %957 = vst.msk [vmem:[%s203 + $0x48] sm:$0xff] %vm399, %v941
        %958 = vst.msk [vmem:[%s203 + $0x50] sm:$0xff] %vm399, %v942
        %959 = vst.msk [vmem:[%s203 + $0x58] sm:$0xff] %vm399, %v943
        %960 = vst.msk [vmem:[%s203 + $0x60] sm:$0xff] %vm399, %v944
        %961 = vst.msk [vmem:[%s203 + $0x68] sm:$0xff] %vm399, %v945
        %962 = vst.msk [vmem:[%s203 + $0x70] sm:$0xff] %vm399, %v946
        %963 = vst.msk [vmem:[%s203 + $0x78] sm:$0xff] %vm399, %v947
        %s964 = sand.u32 %s82, 1
        %s965 = scalar_lea.sflag [#allocation4], %s964
        %s966 = sand.u32 %s82, 1
        %s967 = smul.addr %s966, 128
        %s968 = scalar_lea.vmem [#allocation7], %s967
        // Predicated region
        $region37: #{tpu_custom_call.1} parent=27 // pred_check
          %p969 = pneg %p92
        $region38: #{tpu_custom_call.1} parent=27 // pred_check_branch
          %971 = sbr.rel (%p969) target = $region40
        $region39: #{tpu_custom_call.1} parent=27 // pred_region
          %s972 = smul.u32 4, %s22
          %s974 = ssub.s32 2048, 2048
          %975 = vsyncadd %s965, %s974
          %s976 = smul.addr %s972, 4
          %s977 = smul.addr %s976, 128
          %s978 = scalar_lea.hbm %s2, %s977
          %s979 = sshll.u32 %s968, 4
          %s980 = int_to_ptr.vmem [resolvable:$true] %s979
          %985 = dma.vmem_to_hbm [thread:$0]  %s980, 2048, %s978, %s965, 128, 128, 8
        $region40: #{tpu_custom_call.1} parent=27 // pred_fallthru
          _
      $region28: #{tpu_custom_call.1} parent=5 // pred_fallthru
        _
      %p986 = scmp.le.s32.totalorder 2, %s17
      // Predicated region
      $region41: #{tpu_custom_call.1} parent=5 // pred_check
        %p987 = pneg %p986
      $region42: #{tpu_custom_call.1} parent=5 // pred_check_branch
        %989 = sbr.rel (%p987) target = $region44
      $region43: #{tpu_custom_call.1} parent=5 // pred_region
        %s990 = ssub.s32 %s17, 2
        // Predicated region
        $region45: #{tpu_custom_call.1} parent=43 // pred_check
          %p991 = pneg %p98
        $region46: #{tpu_custom_call.1} parent=43 // pred_check_branch
          %993 = sbr.rel (%p991) target = $region48
        $region47: #{tpu_custom_call.1} parent=43 // pred_region
          %s994 = sand.u32 %s83, 1
          %s995 = scalar_lea.sflag [#allocation4], %s994
          %s996 = sand.u32 %s83, 1
          %s997 = smul.addr %s996, 128
          %s998 = scalar_lea.vmem [#allocation7], %s997
          %999 = dma.done %s995, 2048
        $region48: #{tpu_custom_call.1} parent=43 // pred_fallthru
          _
      $region44: #{tpu_custom_call.1} parent=5 // pred_fallthru
        _
    $region6: #{tpu_custom_call.1} parent=1 // loop_footer
      %s21 = sadd.s32 1, %s17
    $region7: #{tpu_custom_call.1} parent=1 // loop_footer_branch
      %16 = sbr.rel target = $region3
    $region8: #{tpu_custom_call.1} parent=1 // loop_exit
      _
    %1000 = vsyncpa [#allocation3], 1
    %s1001 = scalar_lea.sflag [#allocation3], 1
    %1002 = vsyncpa %s1001, 1
    %1003 = vsyncpa [#allocation6], 1
    %s1004 = scalar_lea.sflag [#allocation6], 1
    %1005 = vsyncpa %s1004, 1
    %1006 = vsyncpa [#allocation4], 1
    %s1007 = scalar_lea.sflag [#allocation4], 1
    %1008 = vsyncpa %s1007, 1

</llo_original>
